<compile_context>
chip_gen: v5e
topology: v5e:2x2
jax: 0.10.0
libtpu: 0.0.40
codegen_flags: <defaults>
</compile_context>

<pallas_src>
import jax
import jax.numpy as jnp
from jax.experimental import pallas as pl
from jax.experimental.pallas import tpu as pltpu


def _round_up(x, m):
    return ((x + m - 1) // m) * m


def make_mlp_kernel(num_layers):
    """Pallas kernel for an MLP with (num_layers - 1) hidden Linear+ReLU layers
    followed by a Linear(hidden, 2) head, softplus + 1e-6 on the variance row."""

    def kernel(*refs):
        # refs = (xT_ref, w0, b0, w1, b1, ..., w_out, b_out, o_ref)
        x_ref = refs[0]
        o_ref = refs[-1]
        p = refs[1:-1]

        h = x_ref[...]  # (input_dim, tile_b), f32, lane-dense over batch

        # Hidden layers: W (fan_out, fan_in) @ h (fan_in, tile_b) + b (fan_out, 1)
        for i in range(num_layers - 1):
            w = p[2 * i][...]
            b = p[2 * i + 1][...]
            h = jnp.dot(w, h, preferred_element_type=jnp.float32) + b
            h = jnp.maximum(h, 0.0)

        # Output head -> (2, tile_b): row 0 = mean, row 1 = raw variance.
        w_out = p[-2][...]
        b_out = p[-1][...]
        out = jnp.dot(w_out, h, preferred_element_type=jnp.float32) + b_out

        # Epilogue: select softplus on the variance row only.  Elementwise
        # (VPU/EUP) — no slices, no concatenate, single unmasked store.
        row = jax.lax.broadcasted_iota(jnp.int32, out.shape, 0)
        o_ref[...] = jnp.where(row == 1, jax.nn.softplus(out) + 1e-6, out)

    return kernel


def mlp_forward(x, params, *, tile_b=256):
    """Run the MLP forward pass with a single Pallas TPU kernel.

    Args:
      x:      (B, input_dim) float32.
      params: list of (W, b); W is (fan_out, fan_in) (PyTorch layout),
              b is (fan_out, 1).  Last pair maps to 2 output units.
    Returns:
      (B, 2) float32: column 0 = mean, column 1 = softplus(var) + 1e-6.
    """
    B, in_dim = x.shape
    num_layers = len(params)

    # Keep the tile a multiple of 128 lanes, but don't over-pad tiny batches.
    tile_b = max(128, min(int(tile_b), _round_up(B, 128)))
    Bp = _round_up(B, tile_b)

    # Feature-major input: (input_dim, Bp).  Pad batch with zeros if needed.
    xT = x.T
    if Bp != B:
        xT = jnp.pad(xT, ((0, 0), (0, Bp - B)))

    grid = (Bp // tile_b,)

    in_specs = [pl.BlockSpec((in_dim, tile_b), lambda i: (0, i))]
    flat_params = []
    for (w, b) in params:
        # Small weights/biases: full-array blocks, constant block index
        # (fetched once, resident across grid steps).
        in_specs.append(pl.BlockSpec(w.shape, lambda i: (0, 0)))
        in_specs.append(pl.BlockSpec(b.shape, lambda i: (0, 0)))
        flat_params.extend([w, b])

    out_specs = pl.BlockSpec((2, tile_b), lambda i: (0, i))

    flops = 2 * Bp * sum(int(w.shape[0]) * int(w.shape[1]) for w, _ in params)
    bytes_accessed = (
        xT.size * 4
        + sum(w.size * 4 + b.size * 4 for w, b in params)
        + 2 * Bp * 4
    )

    outT = pl.pallas_call(
        make_mlp_kernel(num_layers),
        out_shape=jax.ShapeDtypeStruct((2, Bp), jnp.float32),
        grid_spec=pl.GridSpec(
            grid=grid,
            in_specs=in_specs,
            out_specs=out_specs,
        ),
        compiler_params=pltpu.CompilerParams(
            dimension_semantics=("parallel",),
        ),
        cost_estimate=pl.CostEstimate(
            flops=flops,
            transcendentals=Bp,
            bytes_accessed=bytes_accessed,
        ),
    )(xT, *flat_params)

    # Back to (B, 2) row-major, dropping any batch padding.
    return outT[:, :B].T


def init_params(key, input_dim, hidden_sizes):
    """PyTorch-Linear-style init: U(-1/sqrt(fan_in), 1/sqrt(fan_in)).
    Weights stored in PyTorch layout (fan_out, fan_in); biases as (fan_out, 1)."""
    params = []
    dims = [input_dim] + list(hidden_sizes) + [2]
    for fan_in, fan_out in zip(dims[:-1], dims[1:]):
        key, kw, kb = jax.random.split(key, 3)
        bound = 1.0 / jnp.sqrt(jnp.float32(fan_in))
        w = jax.random.uniform(kw, (fan_out, fan_in), jnp.float32, -bound, bound)
        b = jax.random.uniform(kb, (fan_out, 1), jnp.float32, -bound, bound)
        params.append((w, b))
    return params


def reference_forward(x, params):
    """Plain-JAX reference matching the PyTorch module semantics."""
    h = x
    for (w, b) in params[:-1]:
        h = jnp.maximum(h @ w.T + b.T, 0.0)
    w, b = params[-1]
    out = h @ w.T + b.T
    means = out[:, 0:1]
    var = jax.nn.softplus(out[:, 1:2]) + 1e-6
    return jnp.concatenate([means, var], axis=1)


if __name__ == "__main__":
    key = jax.random.PRNGKey(0)
    key, kx1, kx2 = jax.random.split(key, 3)

    input_dim = 8
    hidden_sizes = [32, 32]
    params = init_params(key, input_dim, hidden_sizes)

    # Main run: batch divisible by tile_b, grid of 2 steps (both v7x TCs busy).
    batch = 512
    x = jax.random.normal(kx1, (batch, input_dim), jnp.float32)
    out = jax.block_until_ready(mlp_forward(x, params, tile_b=256))
    ref = reference_forward(x, params)
    assert out.shape == (batch, 2)
    assert jnp.allclose(out, ref, atol=1e-4, rtol=1e-4), "mismatch vs reference"
    assert bool(jnp.all(out[:, 1] > 0.0)), "variance column must be positive"

    # Small / non-divisible batch exercises the wrapper-side padding path.
    x_small = jax.random.normal(kx2, (10, input_dim), jnp.float32)
    out_small = jax.block_until_ready(mlp_forward(x_small, params))
    ref_small = reference_forward(x_small, params)
    assert out_small.shape == (10, 2)
    assert jnp.allclose(out_small, ref_small, atol=1e-4, rtol=1e-4)
    assert bool(jnp.all(out_small[:, 1] > 0.0))

    print("KERNEL_OK")
</pallas_src>

<mosaic_0001>
module attributes {stable_mosaic.version = 11 : i64} {
  func.func @kernel(%arg0: i32, %arg1: memref<8x256xf32, #tpu.memory_space<vmem>>, %arg2: memref<32x8xf32, #tpu.memory_space<vmem>>, %arg3: memref<32x1xf32, #tpu.memory_space<vmem>>, %arg4: memref<32x32xf32, #tpu.memory_space<vmem>>, %arg5: memref<32x1xf32, #tpu.memory_space<vmem>>, %arg6: memref<2x32xf32, #tpu.memory_space<vmem>>, %arg7: memref<2x1xf32, #tpu.memory_space<vmem>>, %arg8: memref<2x256xf32, #tpu.memory_space<vmem>>) attributes {dimension_semantics = [#tpu.dimension_semantics<parallel>], iteration_bounds = array<i64: 2>, scalar_prefetch = 0 : i64, scratch_operands = 0 : i64, tpu.core_type = #tpu.core_type<tc>, window_params = [{transform_indices = @transform_0, window_bounds = array<i64: 8, 256>}, {pipeline_mode = #tpu.pipeline_mode<synchronous>, transform_indices = @transform_1, window_bounds = array<i64: 32, 8>}, {pipeline_mode = #tpu.pipeline_mode<synchronous>, transform_indices = @transform_2, window_bounds = array<i64: 32, 1>}, {pipeline_mode = #tpu.pipeline_mode<synchronous>, transform_indices = @transform_3, window_bounds = array<i64: 32, 32>}, {pipeline_mode = #tpu.pipeline_mode<synchronous>, transform_indices = @transform_4, window_bounds = array<i64: 32, 1>}, {pipeline_mode = #tpu.pipeline_mode<synchronous>, transform_indices = @transform_5, window_bounds = array<i64: 2, 32>}, {pipeline_mode = #tpu.pipeline_mode<synchronous>, transform_indices = @transform_6, window_bounds = array<i64: 2, 1>}, {transform_indices = @transform_7, window_bounds = array<i64: 2, 256>}]} {
    %c0 = arith.constant 0 : index
    %c0_0 = arith.constant 0 : index
    %0 = vector.load %arg1[%c0, %c0_0] : memref<8x256xf32, #tpu.memory_space<vmem>>, vector<8x256xf32>
    %c0_1 = arith.constant 0 : index
    %c0_2 = arith.constant 0 : index
    %1 = vector.load %arg2[%c0_1, %c0_2] : memref<32x8xf32, #tpu.memory_space<vmem>>, vector<32x8xf32>
    %c0_3 = arith.constant 0 : index
    %c0_4 = arith.constant 0 : index
    %2 = vector.load %arg3[%c0_3, %c0_4] : memref<32x1xf32, #tpu.memory_space<vmem>>, vector<32x1xf32>
    %cst = arith.constant dense<0.000000e+00> : vector<32x256xf32>
    %3 = tpu.matmul %1, %0, %cst {dimension_numbers = #tpu.dot_dimension_numbers<[1], [0], [0], [1], [0, 0, 1, 1], [], []>} : vector<32x8xf32>, vector<8x256xf32>, vector<32x256xf32> -> vector<32x256xf32>
    %4 = vector.broadcast %2 : vector<32x1xf32> to vector<32x256xf32>
    %5 = arith.addf %3, %4 : vector<32x256xf32>
    %cst_5 = arith.constant 0.000000e+00 : f32
    %6 = vector.broadcast %cst_5 : f32 to vector<32x256xf32>
    %7 = arith.maximumf %5, %6 : vector<32x256xf32>
    %c0_6 = arith.constant 0 : index
    %c0_7 = arith.constant 0 : index
    %8 = vector.load %arg4[%c0_6, %c0_7] : memref<32x32xf32, #tpu.memory_space<vmem>>, vector<32x32xf32>
    %c0_8 = arith.constant 0 : index
    %c0_9 = arith.constant 0 : index
    %9 = vector.load %arg5[%c0_8, %c0_9] : memref<32x1xf32, #tpu.memory_space<vmem>>, vector<32x1xf32>
    %cst_10 = arith.constant dense<0.000000e+00> : vector<32x256xf32>
    %10 = tpu.matmul %8, %7, %cst_10 {dimension_numbers = #tpu.dot_dimension_numbers<[1], [0], [0], [1], [0, 0, 1, 1], [], []>} : vector<32x32xf32>, vector<32x256xf32>, vector<32x256xf32> -> vector<32x256xf32>
    %11 = vector.broadcast %9 : vector<32x1xf32> to vector<32x256xf32>
    %12 = arith.addf %10, %11 : vector<32x256xf32>
    %cst_11 = arith.constant 0.000000e+00 : f32
    %13 = vector.broadcast %cst_11 : f32 to vector<32x256xf32>
    %14 = arith.maximumf %12, %13 : vector<32x256xf32>
    %c0_12 = arith.constant 0 : index
    %c0_13 = arith.constant 0 : index
    %15 = vector.load %arg6[%c0_12, %c0_13] : memref<2x32xf32, #tpu.memory_space<vmem>>, vector<2x32xf32>
    %c0_14 = arith.constant 0 : index
    %c0_15 = arith.constant 0 : index
    %16 = vector.load %arg7[%c0_14, %c0_15] : memref<2x1xf32, #tpu.memory_space<vmem>>, vector<2x1xf32>
    %cst_16 = arith.constant dense<0.000000e+00> : vector<2x256xf32>
    %17 = tpu.matmul %15, %14, %cst_16 {dimension_numbers = #tpu.dot_dimension_numbers<[1], [0], [0], [1], [0, 0, 1, 1], [], []>} : vector<2x32xf32>, vector<32x256xf32>, vector<2x256xf32> -> vector<2x256xf32>
    %18 = vector.broadcast %16 : vector<2x1xf32> to vector<2x256xf32>
    %19 = arith.addf %17, %18 : vector<2x256xf32>
    %20 = tpu.iota {dimensions = array<i32: 0>} : vector<2x256xi32>
    %c1_i32 = arith.constant 1 : i32
    %21 = vector.broadcast %c1_i32 : i32 to vector<2x256xi32>
    %22 = arith.cmpi eq, %20, %21 : vector<2x256xi32>
    %cst_17 = arith.constant 0.000000e+00 : f32
    %23 = vector.broadcast %cst_17 : f32 to vector<2x256xf32>
    %24 = arith.maximumf %19, %23 : vector<2x256xf32>
    %25 = vector.broadcast %cst_17 : f32 to vector<2x256xf32>
    %26 = arith.subf %19, %25 : vector<2x256xf32>
    %27 = arith.cmpf one, %26, %26 : vector<2x256xf32>
    %28 = vector.broadcast %cst_17 : f32 to vector<2x256xf32>
    %29 = arith.addf %19, %28 : vector<2x256xf32>
    %30 = math.absf %26 : vector<2x256xf32>
    %cst_18 = arith.constant 0.000000e+00 : f32
    %31 = vector.broadcast %cst_18 : f32 to vector<2x256xf32>
    %32 = arith.subf %31, %30 : vector<2x256xf32>
    %33 = math.exp %32 : vector<2x256xf32>
    %34 = math.log1p %33 : vector<2x256xf32>
    %35 = arith.addf %24, %34 : vector<2x256xf32>
    %36 = arith.select %27, %29, %35 : vector<2x256xi1>, vector<2x256xf32>
    %cst_19 = arith.constant 9.99999997E-7 : f32
    %37 = vector.broadcast %cst_19 : f32 to vector<2x256xf32>
    %38 = arith.addf %36, %37 : vector<2x256xf32>
    %39 = arith.select %22, %38, %19 : vector<2x256xi1>, vector<2x256xf32>
    %c0_20 = arith.constant 0 : index
    %c0_21 = arith.constant 0 : index
    %40 = vector.load %arg8[%c0_20, %c0_21] : memref<2x256xf32, #tpu.memory_space<vmem>>, vector<2x256xf32>
    tpu.vector_store %arg8[%c0_20, %c0_21], %39 {strides = array<i32>} : memref<2x256xf32, #tpu.memory_space<vmem>>, vector<2x256xf32>,
    return
  }
  func.func @transform_0(%arg0: i32) -> (i32, i32) {
    %c0_i32 = arith.constant 0 : i32
    %c0_i32_0 = arith.constant 0 : i32
    return %c0_i32, %arg0 : i32, i32
  }
  func.func @transform_1(%arg0: i32) -> (i32, i32) {
    %c0_i32 = arith.constant 0 : i32
    %c0_i32_0 = arith.constant 0 : i32
    %c0_i32_1 = arith.constant 0 : i32
    return %c0_i32, %c0_i32_0 : i32, i32
  }
  func.func @transform_2(%arg0: i32) -> (i32, i32) {
    %c0_i32 = arith.constant 0 : i32
    %c0_i32_0 = arith.constant 0 : i32
    %c0_i32_1 = arith.constant 0 : i32
    return %c0_i32, %c0_i32_0 : i32, i32
  }
  func.func @transform_3(%arg0: i32) -> (i32, i32) {
    %c0_i32 = arith.constant 0 : i32
    %c0_i32_0 = arith.constant 0 : i32
    %c0_i32_1 = arith.constant 0 : i32
    return %c0_i32, %c0_i32_0 : i32, i32
  }
  func.func @transform_4(%arg0: i32) -> (i32, i32) {
    %c0_i32 = arith.constant 0 : i32
    %c0_i32_0 = arith.constant 0 : i32
    %c0_i32_1 = arith.constant 0 : i32
    return %c0_i32, %c0_i32_0 : i32, i32
  }
  func.func @transform_5(%arg0: i32) -> (i32, i32) {
    %c0_i32 = arith.constant 0 : i32
    %c0_i32_0 = arith.constant 0 : i32
    %c0_i32_1 = arith.constant 0 : i32
    return %c0_i32, %c0_i32_0 : i32, i32
  }
  func.func @transform_6(%arg0: i32) -> (i32, i32) {
    %c0_i32 = arith.constant 0 : i32
    %c0_i32_0 = arith.constant 0 : i32
    %c0_i32_1 = arith.constant 0 : i32
    return %c0_i32, %c0_i32_0 : i32, i32
  }
  func.func @transform_7(%arg0: i32) -> (i32, i32) {
    %c0_i32 = arith.constant 0 : i32
    %c0_i32_0 = arith.constant 0 : i32
    return %c0_i32, %arg0 : i32, i32
  }
}

</mosaic_0001>

<llo_original>
// kernel: tpu_custom_call.1
$region0: #{tpu_custom_call.1}
  #allocation0 [shape = 'u32[]', space=smem, size = 0x4, offset = 0x4, fixed_abs, tag = 'smem constant byte address 0x4 - core index']
  #allocation1 [shape = 'u32[72,128]{1,0:T(1,128)}', space=vmem, size = 0x9000, scoped, tag = 'internal scratch']
  %s0 = inlined_call_operand.vmem [shape: f32[8,512], index: 0, kind: input, shape index: {}]
  %s1 = inlined_call_operand.vmem [shape: f32[32,8], index: 1, kind: input, shape index: {}]
  %s2 = inlined_call_operand.vmem [shape: f32[32,1], index: 2, kind: input, shape index: {}]
  %s3 = inlined_call_operand.vmem [shape: f32[32,32], index: 3, kind: input, shape index: {}]
  %s4 = inlined_call_operand.vmem [shape: f32[32,1], index: 4, kind: input, shape index: {}]
  %s5 = inlined_call_operand.vmem [shape: f32[2,32], index: 5, kind: input, shape index: {}]
  %s6 = inlined_call_operand.vmem [shape: f32[2,1], index: 6, kind: input, shape index: {}]
  %s7 = inlined_call_operand.hbm [shape: f32[2,512], index: 7, kind: output, shape index: {}]
  %s8 = sld [smem:[#allocation0]]
  $region61: #{tpu_custom_call.1} parent=0
    _
  %s10 = ssub.s32 1, %s8
  %s11 = scalar_select 0, %s10, %s8
  $region1: #{tpu_custom_call.1} parent=0
    #allocation2 [shape = 'u8[4096]{0}', space=vmem, size = 0x1000, scoped, tag = 'output window, operand 0']
    #allocation3 [shape = 's32[2]{0}', space=sflag, size = 0x8, scoped, tag = 'scoped memory for tpu_custom_call.1']
    %12 = vsyncpa [#allocation3], 0
    %s13 = scalar_lea.sflag [#allocation3], 1
    %14 = vsyncpa %s13, 0
    loop: start=0, step=1, limit=4
    $region2: #{tpu_custom_call.1} parent=1 // loop_pre_header
      _
    $region3: #{tpu_custom_call.1} parent=1 // loop_header
      %s16 = sphi 0, %s20
      %p17 = scmp.ge.s32.totalorder %s16, 4
      %s26 = sphi 0, %s28
      %s29 = sphi 0, %s26
      %s30 = sphi 0, %s29
      %s46 = sphi 0, %s30
      %s50 = sphi 0, %s50
      %s52 = sphi 0, %s50
      %s53 = sphi 0, %s52
      %s67 = sphi 0, %s53
      %s71 = sphi 0, %s71
      %s73 = sphi 0, %s71
      %s74 = sphi 0, %s73
      %s88 = sphi 0, %s74
      %s92 = sphi 0, %s92
      %s94 = sphi 0, %s92
      %s95 = sphi 0, %s94
      %s109 = sphi 0, %s95
      %s113 = sphi 0, %s113
      %s115 = sphi 0, %s113
      %s116 = sphi 0, %s115
      %s130 = sphi 0, %s116
      %s134 = sphi 0, %s134
      %s136 = sphi 0, %s134
      %s137 = sphi 0, %s136
      %s151 = sphi 0, %s137
      %s155 = sphi 0, %s155
      %s157 = sphi 0, %s155
      %s158 = sphi 0, %s157
      %s172 = sphi 0, %s158
      %s178 = sphi 0, %s180
      %s181 = sphi 0, %s178
      %s182 = sphi 0, %s181
      %s198 = sphi 0, %s182
    $region4: #{tpu_custom_call.1} parent=1 // loop_header_branch
      %19 = sbr.rel (%p17) target = $region8
    $region5: #{tpu_custom_call.1} parent=1 // loop_body
      %s21 = ssub.s32 %s16, 1
      %s22 = ssub.s32 %s16, 2
      %s23 = sadd.s32 %s16, 1
      %s24 = ssub.s32 %s16, %s23
      %p25 = scmp.eq.s32.totalorder %s24, 0
      %s27 = sadd.s32 %s26, 1
      %s28 = scalar_select %p25, %s26, %s27
      %p31 = pneg %p25
      %p32 = scmp.eq.s32.totalorder %s16, 1
      %p33 = por %p31, %p32
      %p34 = scmp.ne.s32.totalorder %s26, %s29
      %p35 = scmp.eq.s32.totalorder %s16, 0
      %p36 = por %p34, %p35
      %p37 = scmp.ne.s32.totalorder %s26, %s29
      %p38 = scmp.eq.s32.totalorder %s21, 1
      %p39 = por %p37, %p38
      %p40 = scmp.ne.s32.totalorder %s29, %s30
      %p41 = scmp.eq.s32.totalorder %s21, 0
      %p42 = por %p40, %p41
      %p43 = scmp.ne.s32.totalorder %s29, %s30
      %p44 = scmp.eq.s32.totalorder %s22, 1
      %p45 = por %p43, %p44
      %p47 = scmp.ne.s32.totalorder %s30, %s46
      %p48 = scmp.eq.s32.totalorder %s22, 0
      %p49 = por %p47, %p48
      %s51 = sadd.s32 %s50, 1
      %p54 = scmp.eq.s32.totalorder %s16, 1
      %p55 = scmp.ne.s32.totalorder %s50, %s52
      %p56 = scmp.eq.s32.totalorder %s16, 0
      %p57 = por %p55, %p56
      %p58 = scmp.ne.s32.totalorder %s50, %s52
      %p59 = scmp.eq.s32.totalorder %s21, 1
      %p60 = por %p58, %p59
      %p61 = scmp.ne.s32.totalorder %s52, %s53
      %p62 = scmp.eq.s32.totalorder %s21, 0
      %p63 = por %p61, %p62
      %p64 = scmp.ne.s32.totalorder %s52, %s53
      %p65 = scmp.eq.s32.totalorder %s22, 1
      %p66 = por %p64, %p65
      %p68 = scmp.ne.s32.totalorder %s53, %s67
      %p69 = scmp.eq.s32.totalorder %s22, 0
      %p70 = por %p68, %p69
      %s72 = sadd.s32 %s71, 1
      %p75 = scmp.eq.s32.totalorder %s16, 1
      %p76 = scmp.ne.s32.totalorder %s71, %s73
      %p77 = scmp.eq.s32.totalorder %s16, 0
      %p78 = por %p76, %p77
      %p79 = scmp.ne.s32.totalorder %s71, %s73
      %p80 = scmp.eq.s32.totalorder %s21, 1
      %p81 = por %p79, %p80
      %p82 = scmp.ne.s32.totalorder %s73, %s74
      %p83 = scmp.eq.s32.totalorder %s21, 0
      %p84 = por %p82, %p83
      %p85 = scmp.ne.s32.totalorder %s73, %s74
      %p86 = scmp.eq.s32.totalorder %s22, 1
      %p87 = por %p85, %p86
      %p89 = scmp.ne.s32.totalorder %s74, %s88
      %p90 = scmp.eq.s32.totalorder %s22, 0
      %p91 = por %p89, %p90
      %s93 = sadd.s32 %s92, 1
      %p96 = scmp.eq.s32.totalorder %s16, 1
      %p97 = scmp.ne.s32.totalorder %s92, %s94
      %p98 = scmp.eq.s32.totalorder %s16, 0
      %p99 = por %p97, %p98
      %p100 = scmp.ne.s32.totalorder %s92, %s94
      %p101 = scmp.eq.s32.totalorder %s21, 1
      %p102 = por %p100, %p101
      %p103 = scmp.ne.s32.totalorder %s94, %s95
      %p104 = scmp.eq.s32.totalorder %s21, 0
      %p105 = por %p103, %p104
      %p106 = scmp.ne.s32.totalorder %s94, %s95
      %p107 = scmp.eq.s32.totalorder %s22, 1
      %p108 = por %p106, %p107
      %p110 = scmp.ne.s32.totalorder %s95, %s109
      %p111 = scmp.eq.s32.totalorder %s22, 0
      %p112 = por %p110, %p111
      %s114 = sadd.s32 %s113, 1
      %p117 = scmp.eq.s32.totalorder %s16, 1
      %p118 = scmp.ne.s32.totalorder %s113, %s115
      %p119 = scmp.eq.s32.totalorder %s16, 0
      %p120 = por %p118, %p119
      %p121 = scmp.ne.s32.totalorder %s113, %s115
      %p122 = scmp.eq.s32.totalorder %s21, 1
      %p123 = por %p121, %p122
      %p124 = scmp.ne.s32.totalorder %s115, %s116
      %p125 = scmp.eq.s32.totalorder %s21, 0
      %p126 = por %p124, %p125
      %p127 = scmp.ne.s32.totalorder %s115, %s116
      %p128 = scmp.eq.s32.totalorder %s22, 1
      %p129 = por %p127, %p128
      %p131 = scmp.ne.s32.totalorder %s116, %s130
      %p132 = scmp.eq.s32.totalorder %s22, 0
      %p133 = por %p131, %p132
      %s135 = sadd.s32 %s134, 1
      %p138 = scmp.eq.s32.totalorder %s16, 1
      %p139 = scmp.ne.s32.totalorder %s134, %s136
      %p140 = scmp.eq.s32.totalorder %s16, 0
      %p141 = por %p139, %p140
      %p142 = scmp.ne.s32.totalorder %s134, %s136
      %p143 = scmp.eq.s32.totalorder %s21, 1
      %p144 = por %p142, %p143
      %p145 = scmp.ne.s32.totalorder %s136, %s137
      %p146 = scmp.eq.s32.totalorder %s21, 0
      %p147 = por %p145, %p146
      %p148 = scmp.ne.s32.totalorder %s136, %s137
      %p149 = scmp.eq.s32.totalorder %s22, 1
      %p150 = por %p148, %p149
      %p152 = scmp.ne.s32.totalorder %s137, %s151
      %p153 = scmp.eq.s32.totalorder %s22, 0
      %p154 = por %p152, %p153
      %s156 = sadd.s32 %s155, 1
      %p159 = scmp.eq.s32.totalorder %s16, 1
      %p160 = scmp.ne.s32.totalorder %s155, %s157
      %p161 = scmp.eq.s32.totalorder %s16, 0
      %p162 = por %p160, %p161
      %p163 = scmp.ne.s32.totalorder %s155, %s157
      %p164 = scmp.eq.s32.totalorder %s21, 1
      %p165 = por %p163, %p164
      %p166 = scmp.ne.s32.totalorder %s157, %s158
      %p167 = scmp.eq.s32.totalorder %s21, 0
      %p168 = por %p166, %p167
      %p169 = scmp.ne.s32.totalorder %s157, %s158
      %p170 = scmp.eq.s32.totalorder %s22, 1
      %p171 = por %p169, %p170
      %p173 = scmp.ne.s32.totalorder %s158, %s172
      %p174 = scmp.eq.s32.totalorder %s22, 0
      %p175 = por %p173, %p174
      %s176 = ssub.s32 %s16, %s23
      %p177 = scmp.eq.s32.totalorder %s176, 0
      %s179 = sadd.s32 %s178, 1
      %s180 = scalar_select %p177, %s178, %s179
      %p183 = pneg %p177
      %p184 = scmp.eq.s32.totalorder %s16, 1
      %p185 = por %p183, %p184
      %p186 = scmp.ne.s32.totalorder %s178, %s181
      %p187 = scmp.eq.s32.totalorder %s16, 0
      %p188 = por %p186, %p187
      %p189 = scmp.ne.s32.totalorder %s178, %s181
      %p190 = scmp.eq.s32.totalorder %s21, 1
      %p191 = por %p189, %p190
      %p192 = scmp.ne.s32.totalorder %s181, %s182
      %p193 = scmp.eq.s32.totalorder %s21, 0
      %p194 = por %p192, %p193
      %p195 = scmp.ne.s32.totalorder %s181, %s182
      %p196 = scmp.eq.s32.totalorder %s22, 1
      %p197 = por %p195, %p196
      %p199 = scmp.ne.s32.totalorder %s182, %s198
      %p200 = scmp.eq.s32.totalorder %s22, 0
      %p201 = por %p199, %p200
      %p202 = scmp.le.s32.totalorder 1, %s16
      %p203 = scmp.lt.s32.totalorder %s16, 3
      %p204 = pnand %p202, %p203
      %p205 = pneg %p204
      // Predicated region
      $region9: #{tpu_custom_call.1} parent=5 // pred_check
        _
      $region10: #{tpu_custom_call.1} parent=5 // pred_check_branch
        %207 = sbr.rel (%p204) target = $region12
      $region11: #{tpu_custom_call.1} parent=5 // pred_region
        %s208 = ssub.s32 %s16, 1
        // Predicated region
        $region13: #{tpu_custom_call.1} parent=11 // pred_check
          %p209 = pneg %p63
        $region14: #{tpu_custom_call.1} parent=11 // pred_check_branch
          %211 = sbr.rel (%p209) target = $region16
        $region15: #{tpu_custom_call.1} parent=11 // pred_region
          _
        $region16: #{tpu_custom_call.1} parent=11 // pred_fallthru
          _
        // Predicated region
        $region17: #{tpu_custom_call.1} parent=11 // pred_check
          %p212 = pneg %p84
        $region18: #{tpu_custom_call.1} parent=11 // pred_check_branch
          %214 = sbr.rel (%p212) target = $region20
        $region19: #{tpu_custom_call.1} parent=11 // pred_region
          _
        $region20: #{tpu_custom_call.1} parent=11 // pred_fallthru
          _
        // Predicated region
        $region21: #{tpu_custom_call.1} parent=11 // pred_check
          %p215 = pneg %p105
        $region22: #{tpu_custom_call.1} parent=11 // pred_check_branch
          %217 = sbr.rel (%p215) target = $region24
        $region23: #{tpu_custom_call.1} parent=11 // pred_region
          _
        $region24: #{tpu_custom_call.1} parent=11 // pred_fallthru
          _
        // Predicated region
        $region25: #{tpu_custom_call.1} parent=11 // pred_check
          %p218 = pneg %p126
        $region26: #{tpu_custom_call.1} parent=11 // pred_check_branch
          %220 = sbr.rel (%p218) target = $region28
        $region27: #{tpu_custom_call.1} parent=11 // pred_region
          _
        $region28: #{tpu_custom_call.1} parent=11 // pred_fallthru
          _
        // Predicated region
        $region29: #{tpu_custom_call.1} parent=11 // pred_check
          %p221 = pneg %p147
        $region30: #{tpu_custom_call.1} parent=11 // pred_check_branch
          %223 = sbr.rel (%p221) target = $region32
        $region31: #{tpu_custom_call.1} parent=11 // pred_region
          _
        $region32: #{tpu_custom_call.1} parent=11 // pred_fallthru
          _
        // Predicated region
        $region33: #{tpu_custom_call.1} parent=11 // pred_check
          %p224 = pneg %p168
        $region34: #{tpu_custom_call.1} parent=11 // pred_check_branch
          %226 = sbr.rel (%p224) target = $region36
        $region35: #{tpu_custom_call.1} parent=11 // pred_region
          _
        $region36: #{tpu_custom_call.1} parent=11 // pred_fallthru
          _
      $region12: #{tpu_custom_call.1} parent=5 // pred_fallthru
        _
      %p227 = scmp.lt.s32.totalorder %s16, 2
      // Predicated region
      $region37: #{tpu_custom_call.1} parent=5 // pred_check
        %p228 = pneg %p227
      $region38: #{tpu_custom_call.1} parent=5 // pred_check_branch
        %230 = sbr.rel (%p228) target = $region40
      $region39: #{tpu_custom_call.1} parent=5 // pred_region
        // Predicated region
        $region41: #{tpu_custom_call.1} parent=39 // pred_check
          %p231 = pneg %p36
        $region42: #{tpu_custom_call.1} parent=39 // pred_check_branch
          %233 = sbr.rel (%p231) target = $region44
        $region43: #{tpu_custom_call.1} parent=39 // pred_region
          %s234 = smul.u32 2, %s16
          %p235 = scmp.lt.s32.totalorder %s234, 3
          %s236 = scalar_select %p235, %s234, 3
          %s237 = smul.addr %s236, 8
          %s238 = scalar_lea.vmem %s0, %s237
          %s239 = smul.u32 2, %s16
        $region44: #{tpu_custom_call.1} parent=39 // pred_fallthru
          _
      $region40: #{tpu_custom_call.1} parent=5 // pred_fallthru
        _
      %p240 = scmp.le.s32.totalorder 1, %s16
      %p241 = scmp.lt.s32.totalorder %s16, 3
      %p242 = pnand %p240, %p241
      %p243 = pneg %p242
      // Predicated region
      $region45: #{tpu_custom_call.1} parent=5 // pred_check
        _
      $region46: #{tpu_custom_call.1} parent=5 // pred_check_branch
        %245 = sbr.rel (%p242) target = $region48
      $region47: #{tpu_custom_call.1} parent=5 // pred_region
        %s246 = ssub.s32 %s16, 1
        %s247 = smul.u32 2, %s21
        %p248 = scmp.lt.s32.totalorder %s247, 3
        %s249 = scalar_select %p248, %s247, 3
        %s250 = smul.addr %s249, 8
        %s251 = scalar_lea.vmem %s0, %s250
        %p252 = pneg %p42
        %p253 = pneg %p39
        %p254 = pneg %p63
        %p255 = pneg %p60
        %p256 = pneg %p84
        %p257 = pneg %p81
        %p258 = pneg %p105
        %p259 = pneg %p102
        %p260 = pneg %p126
        %p261 = pneg %p123
        %p262 = pneg %p147
        %p263 = pneg %p144
        %p264 = pneg %p168
        %p265 = pneg %p165
        %p266 = pneg %p194
        %p267 = pneg %p191
        %s268 = sand.u32 %s181, 1
        %s269 = scalar_lea.sflag [#allocation3], %s268
        %s270 = sand.u32 %s181, 1
        %s271 = smul.addr %s270, 4
        %s272 = scalar_lea.vmem [#allocation2], %s271
        %s273 = smul.u32 2, %s21
        %p274 = scmp.lt.s32.totalorder %s273, 3
        %s275 = scalar_select %p274, %s273, 3
        %s276 = smul.addr %s275, 8
        %s277 = scalar_lea.vmem %s0, %s276
        %s278 = smul.u32 2, %s21
        %s279 = smul.u32 2, %s21
        %v280 = vld [vmem:[%s277] sm:$0xff]
        %v281 = vld [vmem:[%s277 + $0x8] sm:$0xff]
        %v282 = vld [vmem:[%s1] sm:$0xff]
        %v283 = vld [vmem:[%s1 + $0x8] sm:$0xff]
        %v284 = vld [vmem:[%s1 + $0x10] sm:$0xff]
        %v285 = vld [vmem:[%s1 + $0x18] sm:$0xff]
        %v286 = vld [vmem:[%s2] sm:$0xff]
        %v287 = vld [vmem:[%s2 + $0x8] sm:$0xff]
        %v288 = vld [vmem:[%s2 + $0x10] sm:$0xff]
        %v289 = vld [vmem:[%s2 + $0x18] sm:$0xff]
        %291 = vset.pattern.permute.xlu0 0
        %292 = vperm.xlu0 %291, %v286
        %v293 = vpop.permute.xlu0 %292
        %296 = vset.pattern.permute.xlu0 0
        %297 = vperm.xlu0 %296, %v287
        %v298 = vpop.permute.xlu0 %297
        %301 = vset.pattern.permute.xlu0 0
        %302 = vperm.xlu0 %301, %v288
        %v303 = vpop.permute.xlu0 %302
        %306 = vset.pattern.permute.xlu0 0
        %307 = vperm.xlu0 %306, %v289
        %v308 = vpop.permute.xlu0 %307
        %vm310 = vcmask 64512
        %v312 = vsel %vm310, %v282, 0
        %v315 = vsel %vm310, %v283, 0
        %v318 = vsel %vm310, %v284, 0
        %v321 = vsel %vm310, %v285, 0
        %323 = vmatpush.msra.mxu0 0.0
        %324 = vmatpush.msra.mxu0 0.0
        %325 = vmatpush.msra.mxu0 0.0
        %326 = vmatpush.msra.mxu0 0.0
        %327 = vmatpush.msra.mxu0 0.0
        %328 = vmatpush.msra.mxu0 0.0
        %329 = vmatpush.msra.mxu0 0.0
        %330 = vmatpush.msra.mxu0 0.0
        %331 = vmatpush.msra.mxu0 0.0
        %332 = vmatpush.msra.mxu0 0.0
        %333 = vmatpush.msra.mxu0 0.0
        %334 = vmatpush.msra.mxu0 0.0
        %335 = vmatpush.msra.mxu0 0.0
        %336 = vmatpush.msra.mxu0 0.0
        %337 = vmatpush.msra.mxu0 0.0
        %338 = vmatpush.msra.mxu0 %v280
        %339 = vmatmul.f32.gmra.mxu0 %v312
        %v340 = vpop.f32.mrf.mxu0
        %v341 = vadd.f32 %v293, %v340
        %342 = vmatmul.f32.gmra.mxu0 %v315
        %v343 = vpop.f32.mrf.mxu0
        %v344 = vadd.f32 %v298, %v343
        %345 = vmatmul.f32.gmra.mxu0 %v318
        %v346 = vpop.f32.mrf.mxu0
        %v347 = vadd.f32 %v303, %v346
        %348 = vmatmul.f32.gmra.mxu0 %v321
        %v349 = vpop.f32.mrf.mxu0
        %v350 = vadd.f32 %v308, %v349
        %351 = vdwg.mxu0
        %352 = vmatpush.msra.mxu0 0.0
        %353 = vmatpush.msra.mxu0 0.0
        %354 = vmatpush.msra.mxu0 0.0
        %355 = vmatpush.msra.mxu0 0.0
        %356 = vmatpush.msra.mxu0 0.0
        %357 = vmatpush.msra.mxu0 0.0
        %358 = vmatpush.msra.mxu0 0.0
        %359 = vmatpush.msra.mxu0 0.0
        %360 = vmatpush.msra.mxu0 0.0
        %361 = vmatpush.msra.mxu0 0.0
        %362 = vmatpush.msra.mxu0 0.0
        %363 = vmatpush.msra.mxu0 0.0
        %364 = vmatpush.msra.mxu0 0.0
        %365 = vmatpush.msra.mxu0 0.0
        %366 = vmatpush.msra.mxu0 0.0
        %367 = vmatpush.msra.mxu0 %v281
        %368 = vmatmul.f32.gmra.mxu0 %v312
        %v369 = vpop.f32.mrf.mxu0
        %v370 = vadd.f32 %v293, %v369
        %371 = vmatmul.f32.gmra.mxu0 %v315
        %v372 = vpop.f32.mrf.mxu0
        %v373 = vadd.f32 %v298, %v372
        %374 = vmatmul.f32.gmra.mxu0 %v318
        %v375 = vpop.f32.mrf.mxu0
        %v376 = vadd.f32 %v303, %v375
        %377 = vmatmul.f32.gmra.mxu0 %v321
        %v378 = vpop.f32.mrf.mxu0
        %v379 = vadd.f32 %v308, %v378
        %380 = vdwg.mxu0
        %v381 = vmax.f32 %v341, 0.0
        %v382 = vmax.f32 %v370, 0.0
        %v383 = vmax.f32 %v344, 0.0
        %v384 = vmax.f32 %v373, 0.0
        %v385 = vmax.f32 %v347, 0.0
        %v386 = vmax.f32 %v376, 0.0
        %v387 = vmax.f32 %v350, 0.0
        %v388 = vmax.f32 %v379, 0.0
        %v389 = vld [vmem:[%s3] sm:$0xff]
        %v390 = vld [vmem:[%s3 + $0x8] sm:$0xff]
        %v391 = vld [vmem:[%s3 + $0x10] sm:$0xff]
        %v392 = vld [vmem:[%s3 + $0x18] sm:$0xff]
        %v393 = vld [vmem:[%s4] sm:$0xff]
        %v394 = vld [vmem:[%s4 + $0x8] sm:$0xff]
        %v395 = vld [vmem:[%s4 + $0x10] sm:$0xff]
        %v396 = vld [vmem:[%s4 + $0x18] sm:$0xff]
        %398 = vset.pattern.permute.xlu0 0
        %399 = vperm.xlu0 %398, %v393
        %v400 = vpop.permute.xlu0 %399
        %403 = vset.pattern.permute.xlu0 0
        %404 = vperm.xlu0 %403, %v394
        %v405 = vpop.permute.xlu0 %404
        %408 = vset.pattern.permute.xlu0 0
        %409 = vperm.xlu0 %408, %v395
        %v410 = vpop.permute.xlu0 %409
        %413 = vset.pattern.permute.xlu0 0
        %414 = vperm.xlu0 %413, %v396
        %v415 = vpop.permute.xlu0 %414
        %vm417 = vcmask 261120
        %v419 = vsel %vm417, %v389, 0
        %v422 = vsel %vm417, %v390, 0
        %v425 = vsel %vm417, %v391, 0
        %v428 = vsel %vm417, %v392, 0
        %430 = vmatpush.msra.mxu0 0.0
        %431 = vmatpush.msra.mxu0 0.0
        %432 = vmatpush.msra.mxu0 0.0
        %433 = vmatpush.msra.mxu0 0.0
        %434 = vmatpush.msra.mxu0 0.0
        %435 = vmatpush.msra.mxu0 0.0
        %436 = vmatpush.msra.mxu0 0.0
        %437 = vmatpush.msra.mxu0 0.0
        %438 = vmatpush.msra.mxu0 0.0
        %439 = vmatpush.msra.mxu0 0.0
        %440 = vmatpush.msra.mxu0 0.0
        %441 = vmatpush.msra.mxu0 0.0
        %442 = vmatpush.msra.mxu0 %v387
        %443 = vmatpush.msra.mxu0 %v385
        %444 = vmatpush.msra.mxu0 %v383
        %445 = vmatpush.msra.mxu0 %v381
        %446 = vmatmul.f32.gmra.mxu0 %v419
        %v447 = vpop.f32.mrf.mxu0
        %v448 = vadd.f32 %v400, %v447
        %449 = vmatmul.f32.gmra.mxu0 %v422
        %v450 = vpop.f32.mrf.mxu0
        %v451 = vadd.f32 %v405, %v450
        %452 = vmatmul.f32.gmra.mxu0 %v425
        %v453 = vpop.f32.mrf.mxu0
        %v454 = vadd.f32 %v410, %v453
        %455 = vmatmul.f32.gmra.mxu0 %v428
        %v456 = vpop.f32.mrf.mxu0
        %v457 = vadd.f32 %v415, %v456
        %458 = vdwg.mxu0
        %459 = vmatpush.msra.mxu0 0.0
        %460 = vmatpush.msra.mxu0 0.0
        %461 = vmatpush.msra.mxu0 0.0
        %462 = vmatpush.msra.mxu0 0.0
        %463 = vmatpush.msra.mxu0 0.0
        %464 = vmatpush.msra.mxu0 0.0
        %465 = vmatpush.msra.mxu0 0.0
        %466 = vmatpush.msra.mxu0 0.0
        %467 = vmatpush.msra.mxu0 0.0
        %468 = vmatpush.msra.mxu0 0.0
        %469 = vmatpush.msra.mxu0 0.0
        %470 = vmatpush.msra.mxu0 0.0
        %471 = vmatpush.msra.mxu0 %v388
        %472 = vmatpush.msra.mxu0 %v386
        %473 = vmatpush.msra.mxu0 %v384
        %474 = vmatpush.msra.mxu0 %v382
        %475 = vmatmul.f32.gmra.mxu0 %v419
        %v476 = vpop.f32.mrf.mxu0
        %v477 = vadd.f32 %v400, %v476
        %478 = vmatmul.f32.gmra.mxu0 %v422
        %v479 = vpop.f32.mrf.mxu0
        %v480 = vadd.f32 %v405, %v479
        %481 = vmatmul.f32.gmra.mxu0 %v425
        %v482 = vpop.f32.mrf.mxu0
        %v483 = vadd.f32 %v410, %v482
        %484 = vmatmul.f32.gmra.mxu0 %v428
        %v485 = vpop.f32.mrf.mxu0
        %v486 = vadd.f32 %v415, %v485
        %487 = vdwg.mxu0
        %v488 = vmax.f32 %v448, 0.0
        %v489 = vmax.f32 %v477, 0.0
        %v490 = vmax.f32 %v451, 0.0
        %v491 = vmax.f32 %v480, 0.0
        %v492 = vmax.f32 %v454, 0.0
        %v493 = vmax.f32 %v483, 0.0
        %v494 = vmax.f32 %v457, 0.0
        %v495 = vmax.f32 %v486, 0.0
        %v496 = vld [vmem:[%s5] sm:$0x3]
        %v497 = vld [vmem:[%s6] sm:$0x3]
        %499 = vset.pattern.permute.xlu0 0
        %500 = vperm.xlu0 %499, %v497
        %v501 = vpop.permute.xlu0 %500
        %v504 = vsel %vm417, %v496, 0
        %506 = vmatpush.msra.mxu0 0.0
        %507 = vmatpush.msra.mxu0 0.0
        %508 = vmatpush.msra.mxu0 0.0
        %509 = vmatpush.msra.mxu0 0.0
        %510 = vmatpush.msra.mxu0 0.0
        %511 = vmatpush.msra.mxu0 0.0
        %512 = vmatpush.msra.mxu0 0.0
        %513 = vmatpush.msra.mxu0 0.0
        %514 = vmatpush.msra.mxu0 0.0
        %515 = vmatpush.msra.mxu0 0.0
        %516 = vmatpush.msra.mxu0 0.0
        %517 = vmatpush.msra.mxu0 0.0
        %518 = vmatpush.msra.mxu0 %v494
        %519 = vmatpush.msra.mxu0 %v492
        %520 = vmatpush.msra.mxu0 %v490
        %521 = vmatpush.msra.mxu0 %v488
        %522 = vmatmul.f32.gmra.mxu0 %v504
        %v523 = vpop.f32.mrf.mxu0
        %v524 = vadd.f32 %v501, %v523
        %525 = vdwg.mxu0
        %526 = vmatpush.msra.mxu0 0.0
        %527 = vmatpush.msra.mxu0 0.0
        %528 = vmatpush.msra.mxu0 0.0
        %529 = vmatpush.msra.mxu0 0.0
        %530 = vmatpush.msra.mxu0 0.0
        %531 = vmatpush.msra.mxu0 0.0
        %532 = vmatpush.msra.mxu0 0.0
        %533 = vmatpush.msra.mxu0 0.0
        %534 = vmatpush.msra.mxu0 0.0
        %535 = vmatpush.msra.mxu0 0.0
        %536 = vmatpush.msra.mxu0 0.0
        %537 = vmatpush.msra.mxu0 0.0
        %538 = vmatpush.msra.mxu0 %v495
        %539 = vmatpush.msra.mxu0 %v493
        %540 = vmatpush.msra.mxu0 %v491
        %541 = vmatpush.msra.mxu0 %v489
        %542 = vmatmul.f32.gmra.mxu0 %v504
        %v543 = vpop.f32.mrf.mxu0
        %v544 = vadd.f32 %v501, %v543
        %545 = vdwg.mxu0
        %v546 = vlaneseq
        %v547 = vshrl.u32 %v546, 7
        %vm548 = vcmp.eq.s32.totalorder %v547, 1
        %v549 = vmax.f32 %v524, 0.0
        %v550 = vmax.f32 %v544, 0.0
        %vm551 = vcmp.ne.f32.partialorder %v524, %v524
        %vm552 = vcmp.ne.f32.partialorder %v544, %v544
        %v553 = vadd.f32 %v524, 0.0
        %v554 = vadd.f32 %v544, 0.0
        %v555 = vand.u32 2147483647, %v524
        %v556 = vand.u32 2147483647, %v544
        %v557 = vsub.f32 0.0, %v555
        %v558 = vsub.f32 0.0, %v556
        %v559 = vmul.f32 %v557, 1.442695
        %v560 = vpow.pop %v559
        %v561 = vmul.f32 %v558, 1.442695
        %v562 = vpow.pop %v561
        %v563 = vadd.f32 %v560, 1.0
        %v564 = vlog2.pop %v563
        %v565 = vmul.f32 %v564, 0.6931472
        %v566 = vmul.f32 -0.5, %v560
        %v567 = vadd.f32 %v566, 1.0
        %v568 = vmul.f32 %v567, %v560
        %v569 = vand.u32 2147483647, %v560
        %vm570 = vcmp.lt.f32.partialorder %v569, 0.0004427343
        %v571 = vsel %vm570, %v568, %v565
        %v572 = vadd.f32 %v562, 1.0
        %v573 = vlog2.pop %v572
        %v574 = vmul.f32 %v573, 0.6931472
        %v575 = vmul.f32 -0.5, %v562
        %v576 = vadd.f32 %v575, 1.0
        %v577 = vmul.f32 %v576, %v562
        %v578 = vand.u32 2147483647, %v562
        %vm579 = vcmp.lt.f32.partialorder %v578, 0.0004427343
        %v580 = vsel %vm579, %v577, %v574
        %v581 = vadd.f32 %v549, %v571
        %v582 = vadd.f32 %v550, %v580
        %v583 = vsel %vm551, %v553, %v581
        %v584 = vsel %vm552, %v554, %v582
        %v585 = vadd.f32 %v583, 1e-06
        %v586 = vadd.f32 %v584, 1e-06
        %v587 = vsel %vm548, %v585, %v524
        %v588 = vsel %vm548, %v586, %v544
        %v591 = vrot.slane %v588, 6
        %vm592 = vcmask 1041408
        %v593 = vsel %vm592, %v587, %v591
        %595 = vst [vmem:[%s272] sm:$0xf] %v593
        %s596 = sand.u32 %s181, 1
        %s597 = scalar_lea.sflag [#allocation3], %s596
        %s598 = sand.u32 %s181, 1
        %s599 = smul.addr %s598, 4
        %s600 = scalar_lea.vmem [#allocation2], %s599
        // Predicated region
        $region49: #{tpu_custom_call.1} parent=47 // pred_check
          %p601 = pneg %p191
        $region50: #{tpu_custom_call.1} parent=47 // pred_check_branch
          %603 = sbr.rel (%p601) target = $region52
        $region51: #{tpu_custom_call.1} parent=47 // pred_region
          %s604 = smul.u32 2, %s21
          %606 = vsyncadd %s597, 0
          %s607 = smul.addr %s604, 2
          %s608 = scalar_lea.hbm %s7, %s607
          %s610 = sshll.u32 %s600, 4
          %s611 = int_to_ptr.vmem [resolvable:$true] %s610
          %s612 = sshll.u32 %s608, 4
          %s613 = int_to_ptr.hbm [resolvable:$true] %s612
          %615 = dma.vmem_to_hbm [thread:$0]  %s611, 64, %s613, %s597
        $region52: #{tpu_custom_call.1} parent=47 // pred_fallthru
          _
      $region48: #{tpu_custom_call.1} parent=5 // pred_fallthru
        _
      %p616 = scmp.le.s32.totalorder 2, %s16
      // Predicated region
      $region53: #{tpu_custom_call.1} parent=5 // pred_check
        %p617 = pneg %p616
      $region54: #{tpu_custom_call.1} parent=5 // pred_check_branch
        %619 = sbr.rel (%p617) target = $region56
      $region55: #{tpu_custom_call.1} parent=5 // pred_region
        %s620 = ssub.s32 %s16, 2
        // Predicated region
        $region57: #{tpu_custom_call.1} parent=55 // pred_check
          %p621 = pneg %p197
        $region58: #{tpu_custom_call.1} parent=55 // pred_check_branch
          %623 = sbr.rel (%p621) target = $region60
        $region59: #{tpu_custom_call.1} parent=55 // pred_region
          %s624 = sand.u32 %s182, 1
          %s625 = scalar_lea.sflag [#allocation3], %s624
          %s626 = sand.u32 %s182, 1
          %s627 = smul.addr %s626, 4
          %s628 = scalar_lea.vmem [#allocation2], %s627
          %630 = dma.done %s625, 64
        $region60: #{tpu_custom_call.1} parent=55 // pred_fallthru
          _
      $region56: #{tpu_custom_call.1} parent=5 // pred_fallthru
        _
    $region6: #{tpu_custom_call.1} parent=1 // loop_footer
      %s20 = sadd.s32 1, %s16
    $region7: #{tpu_custom_call.1} parent=1 // loop_footer_branch
      %15 = sbr.rel target = $region3
    $region8: #{tpu_custom_call.1} parent=1 // loop_exit
      _
    %631 = vsyncpa [#allocation3], 1
    %s632 = scalar_lea.sflag [#allocation3], 1
    %633 = vsyncpa %s632, 1

</llo_original>
